<compile_context>
chip_gen: v7x
topology: tpu7x:2x2x1
jax: 0.10.0
libtpu: 0.0.40
codegen_flags: <defaults>
</compile_context>

<pallas_src>
import functools

import jax
import jax.numpy as jnp
from jax import lax
from jax.experimental import pallas as pl
from jax.experimental.pallas import tpu as pltpu

_MIB = 1024 * 1024


# ------------------------------ kernels ------------------------------


def _ccbn_single_pass_kernel(x_ref, g_ref, b_ref, o_ref, *, eps, count):
    # One grid step owns a full (N, tc, S) slab: stats + apply in a single HBM pass.
    # f32 temporaries are streamed (no long-lived f32 copy of the whole slab — matters
    # for bf16 inputs where the upcast would double the resident footprint).
    s1 = jnp.sum(x_ref[...].astype(jnp.float32), axis=(0, 2))               # (tc,)
    s2 = jnp.sum(jnp.square(x_ref[...].astype(jnp.float32)), axis=(0, 2))   # (tc,)
    mean = s1 / count
    var = jnp.maximum(s2 / count - mean * mean, 0.0)     # guard E[x^2]-m^2 cancellation
    inv_std = lax.rsqrt(var + eps)                       # (tc,)

    # Fold BN + class-conditional affine into one scale/shift per (n, c).
    scale = g_ref[...].astype(jnp.float32) * inv_std[None, :, None]         # (N, tc, 1)
    shift = b_ref[...].astype(jnp.float32) - mean[None, :, None] * scale    # (N, tc, 1)
    o_ref[...] = (x_ref[...].astype(jnp.float32) * scale + shift).astype(o_ref.dtype)


def _ccbn_two_phase_kernel(x_ref, g_ref, b_ref, o_ref,
                           s1_ref, s2_ref, sc_ref, sh_ref, *,
                           eps, count, n_s_tiles):
    # grid = (C // tc, 2 * n_s_tiles); axis 1: [0, St) = stats pass, [St, 2St) = apply pass.
    s = pl.program_id(1)
    ts = x_ref.shape[2]
    n_chunks = ts // 128          # ts is always a multiple of 128 on this path

    @pl.when(s == 0)
    def _():
        s1_ref[...] = jnp.zeros_like(s1_ref)
        s2_ref[...] = jnp.zeros_like(s2_ref)

    @pl.when(s < n_s_tiles)
    def _():
        # VPU-only accumulation: per-lane partial sums into (tc, 128) scratch.
        # The single cross-lane XLU reduce happens once, at the start of the apply pass.
        for j in range(n_chunks):
            xc = x_ref[:, :, j * 128:(j + 1) * 128].astype(jnp.float32)     # (N, tc, 128)
            s1_ref[...] += jnp.sum(xc, axis=0)
            s2_ref[...] += jnp.sum(xc * xc, axis=0)

    @pl.when(s == n_s_tiles)
    def _():
        # Finalize stats once per channel tile; cache folded scale/shift in VMEM.
        s1 = jnp.sum(s1_ref[...], axis=1)                 # (tc,)  one lane reduce
        s2 = jnp.sum(s2_ref[...], axis=1)
        mean = s1 / count
        var = jnp.maximum(s2 / count - mean * mean, 0.0)
        inv_std = lax.rsqrt(var + eps)
        scale = g_ref[...].astype(jnp.float32) * inv_std[None, :, None]     # (N, tc, 1)
        sc_ref[...] = scale
        sh_ref[...] = b_ref[...].astype(jnp.float32) - mean[None, :, None] * scale

    @pl.when(s >= n_s_tiles)
    def _():
        o_ref[...] = (x_ref[...].astype(jnp.float32) * sc_ref[...]
                      + sh_ref[...]).astype(o_ref.dtype)


# ------------------------------ tile / budget selection ------------------------------


def _sublane_granularity(dtype):
    """Channel-tile granularity so packed sub-32-bit dtypes fill whole vregs."""
    bits = jnp.dtype(dtype).itemsize * 8
    return max(8, 256 // max(bits, 1))     # f32 -> 8, bf16/f16 -> 16, int8/fp8 -> 32


def _vmem_capacity_bytes():
    try:
        cap = getattr(pltpu.get_tpu_info(), "vmem_capacity_bytes", None)
        if cap:
            return int(cap)
    except Exception:
        pass
    return 64 * _MIB                       # conservative default (v7x: 64 MiB / TensorCore)


def _default_budgets():
    cap = _vmem_capacity_bytes()
    if cap >= 128 * _MIB:
        # v5e / v6e: 128 MiB VMEM, lower HBM BW -> spend VMEM to stay single-pass.
        return 96 * _MIB, 6 * _MIB
    # v7x: 64 MiB per TensorCore -> leave headroom for compiler scratch / spills.
    return 36 * _MIB, 2 * _MIB + _MIB // 2


def _select_tiles(N, C, S, itemsize, granularity, *, channel_tile, spatial_tile,
                  block_target_bytes, vmem_limit_bytes):
    budget = int(0.75 * vmem_limit_bytes)

    def est_single(tc):
        io = N * tc * S * itemsize                    # one x / out block in its own dtype
        return 4 * io + 2 * N * tc * S * 4            # 2-deep in+out buffers + f32 temps

    def est_two(tc, ts):
        io = N * tc * ts * itemsize
        scratch = 2 * tc * 128 * 4 + 2 * N * tc * 4
        return 4 * io + 2 * N * tc * ts * 4 + scratch

    # ---- channel-tile candidates ----
    if channel_tile is not None:
        tc_user = int(channel_tile)
        assert C % tc_user == 0 and (tc_user % granularity == 0 or tc_user == C), (
            "channel_tile must divide C and be a multiple of %d (or equal C)" % granularity)
        cands = [tc_user]
    else:
        cands = sorted({d for d in range(granularity, C + 1, granularity) if C % d == 0} | {C})
        if len(cands) > 1:
            # Keep >= 2 steps on the parallel (channel) grid axis for v7x's two TensorCores.
            cands = [t for t in cands if t < C]
    tc_min = min(cands)

    # ---- user-forced spatial tile ----
    if spatial_tile is not None:
        ts = int(spatial_tile)
        assert S % ts == 0 and (ts % 128 == 0 or ts == S), (
            "spatial_tile must divide S and be a multiple of 128 (or equal S)")
        two_phase = ts < S
        est = (lambda t: est_two(t, ts)) if two_phase else est_single
        fit = [t for t in cands if est(t) <= budget] or [tc_min]
        pref = [t for t in fit if N * t * ts * itemsize <= block_target_bytes]
        return (max(pref) if pref else min(fit)), ts, two_phase

    # ---- auto: single pass whenever the minimal slab fits (avoids a 3rd HBM pass) ----
    if est_single(tc_min) <= budget or S % 128 != 0:
        fit = [t for t in cands if est_single(t) <= budget] or [tc_min]
        # TODO(synk): a huge (N, tc_min, S) with S % 128 != 0 can still exceed the budget;
        # a channels-last / batch-tiled fallback for that regime is not emitted here.
        pref = [t for t in fit if N * t * S * itemsize <= block_target_bytes]
        return (max(pref) if pref else min(fit)), S, False

    # ---- two-phase: tile S in 128-lane multiples (cap so the in-kernel chunk loop stays small) ----
    s_cands = [d for d in range(128, min(S, 4096) + 1, 128) if S % d == 0]
    for tc in sorted(cands, reverse=True):
        ok = [t for t in s_cands
              if N * tc * t * itemsize <= block_target_bytes and est_two(tc, t) <= budget]
        if ok:
            return tc, max(ok), True
    return tc_min, 128, True


# ------------------------------ wrapper ------------------------------


def class_conditional_bn(x, y, w_gain, w_bias, *, eps=1e-4,
                         channel_tile=None, spatial_tile=None,
                         block_target_bytes=None, vmem_limit_bytes=None):
    """x: (N, C, H, W); y: (N, K); w_gain/w_bias: PyTorch Linear weights (C, K)
    (already spectral-normalized). Returns (N, C, H, W) in x.dtype."""
    N, C, H, W = x.shape
    S = H * W

    d_vmem, d_block = _default_budgets()
    vmem_limit_bytes = d_vmem if vmem_limit_bytes is None else int(vmem_limit_bytes)
    block_target_bytes = d_block if block_target_bytes is None else int(block_target_bytes)

    # Hoisted class-conditional affine: tiny (N,K)x(K,C) dots stay in XLA.
    yf = y.astype(jnp.float32)
    gain3 = (1.0 + yf @ w_gain.T.astype(jnp.float32))[:, :, None]    # (N, C, 1)
    bias3 = (yf @ w_bias.T.astype(jnp.float32))[:, :, None]          # (N, C, 1)

    x3 = x.reshape(N, C, S)                                          # dtype passes through
    itemsize = jnp.dtype(x.dtype).itemsize
    granularity = _sublane_granularity(x.dtype)

    tc, ts, two_phase = _select_tiles(
        N, C, S, itemsize, granularity,
        channel_tile=channel_tile, spatial_tile=spatial_tile,
        block_target_bytes=block_target_bytes, vmem_limit_bytes=vmem_limit_bytes)

    count = float(N * S)
    eps = float(eps)

    if not two_phase:
        kernel = functools.partial(_ccbn_single_pass_kernel, eps=eps, count=count)
        out3 = pl.pallas_call(
            kernel,
            out_shape=jax.ShapeDtypeStruct((N, C, S), x.dtype),
            grid_spec=pltpu.PrefetchScalarGridSpec(
                num_scalar_prefetch=0,
                grid=(C // tc,),
                in_specs=[
                    pl.BlockSpec((N, tc, S), lambda c: (0, c, 0)),   # x
                    pl.BlockSpec((N, tc, 1), lambda c: (0, c, 0)),   # gain
                    pl.BlockSpec((N, tc, 1), lambda c: (0, c, 0)),   # bias
                ],
                out_specs=pl.BlockSpec((N, tc, S), lambda c: (0, c, 0)),
            ),
            compiler_params=pltpu.CompilerParams(
                dimension_semantics=("parallel",),
                vmem_limit_bytes=vmem_limit_bytes),
        )(x3, gain3, bias3)
    else:
        n_st = S // ts
        kernel = functools.partial(_ccbn_two_phase_kernel, eps=eps, count=count,
                                   n_s_tiles=n_st)

        # Stats pass walks tiles 0..n_st-1; apply pass walks them in REVERSE so the x tile
        # left resident from the last stats step is reused without a fresh DMA.
        def x_idx(c, s):
            return (0, c, jnp.where(s < n_st, s, 2 * n_st - 1 - s))

        def o_idx(c, s):
            # Hold the output block at the apply pass's first index during the stats pass
            # (no writeback until the index changes, by which time it holds real data).
            return (0, c, jnp.where(s < n_st, n_st - 1, 2 * n_st - 1 - s))

        out3 = pl.pallas_call(
            kernel,
            out_shape=jax.ShapeDtypeStruct((N, C, S), x.dtype),
            grid_spec=pltpu.PrefetchScalarGridSpec(
                num_scalar_prefetch=0,
                grid=(C // tc, 2 * n_st),
                in_specs=[
                    pl.BlockSpec((N, tc, ts), x_idx),                     # x
                    pl.BlockSpec((N, tc, 1), lambda c, s: (0, c, 0)),     # gain
                    pl.BlockSpec((N, tc, 1), lambda c, s: (0, c, 0)),     # bias
                ],
                out_specs=pl.BlockSpec((N, tc, ts), o_idx),
                scratch_shapes=[
                    pltpu.VMEM((tc, 128), jnp.float32),    # per-lane partial sum(x)
                    pltpu.VMEM((tc, 128), jnp.float32),    # per-lane partial sum(x^2)
                    pltpu.VMEM((N, tc, 1), jnp.float32),   # folded scale
                    pltpu.VMEM((N, tc, 1), jnp.float32),   # folded shift
                ],
            ),
            compiler_params=pltpu.CompilerParams(
                dimension_semantics=("parallel", "arbitrary"),
                vmem_limit_bytes=vmem_limit_bytes),
        )(x3, gain3, bias3)

    return out3.reshape(N, C, H, W)


# ------------------------------ reference / test ------------------------------


def _spectral_normalize(w):
    # glue: divide by largest singular value (what spectral_norm does at forward)
    sigma = jnp.linalg.svd(w, compute_uv=False)[0]
    return w / sigma


def _reference(x, y, w_gain, w_bias, eps=1e-4):
    xf = x.astype(jnp.float32)
    gain = 1.0 + y @ w_gain.T                                   # (N, C)
    bias = y @ w_bias.T                                         # (N, C)
    mean = jnp.mean(xf, axis=(0, 2, 3))                         # (C,)
    var = jnp.mean(jnp.square(xf), axis=(0, 2, 3)) - mean**2    # biased
    xn = (xf - mean[None, :, None, None]) / jnp.sqrt(var + eps)[None, :, None, None]
    return xn * gain[:, :, None, None] + bias[:, :, None, None]


if __name__ == "__main__":
    eps = 1e-4
    key = jax.random.PRNGKey(0)

    # --- case 1: module-consistent small shapes (input_size=8, output_size=4), auto tiles ---
    N, C, H, W, K = 2, 4, 16, 16, 8
    kx, ky, kg, kb, key = jax.random.split(key, 5)
    x = jax.random.normal(kx, (N, C, H, W), dtype=jnp.float32)
    y = jax.random.normal(ky, (N, K), dtype=jnp.float32)
    w_gain = _spectral_normalize(jax.random.normal(kg, (C, K), jnp.float32) * 0.1)
    w_bias = _spectral_normalize(jax.random.normal(kb, (C, K), jnp.float32) * 0.1)

    out = jax.block_until_ready(class_conditional_bn(x, y, w_gain, w_bias, eps=eps))
    ref = _reference(x, y, w_gain, w_bias, eps=eps)
    assert out.shape == (N, C, H, W)
    assert jnp.max(jnp.abs(out - ref)) < 2e-4

    # --- case 2: forced channel tiling + two-phase stats / reverse-order apply path ---
    N2, C2, H2, W2, K2 = 4, 32, 16, 16, 8
    kx, ky, kg, kb, key = jax.random.split(key, 5)
    x2 = jax.random.normal(kx, (N2, C2, H2, W2), dtype=jnp.float32)
    y2 = jax.random.normal(ky, (N2, K2), dtype=jnp.float32)
    wg2 = _spectral_normalize(jax.random.normal(kg, (C2, K2), jnp.float32) * 0.1)
    wb2 = _spectral_normalize(jax.random.normal(kb, (C2, K2), jnp.float32) * 0.1)

    out2 = jax.block_until_ready(class_conditional_bn(
        x2, y2, wg2, wb2, eps=eps, channel_tile=8, spatial_tile=128))
    ref2 = _reference(x2, y2, wg2, wb2, eps=eps)
    assert out2.shape == (N2, C2, H2, W2)
    assert jnp.max(jnp.abs(out2 - ref2)) < 2e-4

    # --- case 3: bf16 input, S not a multiple of 128 -> dtype-aware (16-row) channel tile ---
    N3, C3, H3, W3, K3 = 2, 32, 8, 8, 8
    kx, ky, kg, kb, key = jax.random.split(key, 5)
    x3 = jax.random.normal(kx, (N3, C3, H3, W3), jnp.float32).astype(jnp.bfloat16)
    y3 = jax.random.normal(ky, (N3, K3), dtype=jnp.float32)
    wg3 = _spectral_normalize(jax.random.normal(kg, (C3, K3), jnp.float32) * 0.1)
    wb3 = _spectral_normalize(jax.random.normal(kb, (C3, K3), jnp.float32) * 0.1)

    out3 = jax.block_until_ready(class_conditional_bn(x3, y3, wg3, wb3, eps=eps))
    ref3 = _reference(x3, y3, wg3, wb3, eps=eps)
    assert out3.shape == (N3, C3, H3, W3)
    assert jnp.max(jnp.abs(out3.astype(jnp.float32) - ref3)) < 5e-2

    print("KERNEL_OK")
</pallas_src>

<mosaic_0001>
module attributes {stable_mosaic.version = 11 : i64} {
  func.func @_ccbn_single_pass_kernel(%arg0: i32, %arg1: memref<2x4x256xf32, #tpu.memory_space<vmem>>, %arg2: memref<2x4x1xf32, #tpu.memory_space<vmem>>, %arg3: memref<2x4x1xf32, #tpu.memory_space<vmem>>, %arg4: memref<2x4x256xf32, #tpu.memory_space<vmem>>) attributes {dimension_semantics = [#tpu.dimension_semantics<parallel>], iteration_bounds = array<i64: 1>, scalar_prefetch = 0 : i64, scratch_operands = 0 : i64, tpu.core_type = #tpu.core_type<tc>, window_params = [{transform_indices = @transform_0, window_bounds = array<i64: 2, 4, 256>}, {transform_indices = @transform_1, window_bounds = array<i64: 2, 4, 1>}, {transform_indices = @transform_2, window_bounds = array<i64: 2, 4, 1>}, {transform_indices = @transform_3, window_bounds = array<i64: 2, 4, 256>}]} {
    %c0 = arith.constant 0 : index
    %c0_0 = arith.constant 0 : index
    %c0_1 = arith.constant 0 : index
    %0 = vector.load %arg1[%c0, %c0_0, %c0_1] : memref<2x4x256xf32, #tpu.memory_space<vmem>>, vector<2x4x256xf32>
    %cst = arith.constant dense<0.000000e+00> : vector<4xf32>
    %1 = vector.multi_reduction <add>, %0, %cst [0, 2] : vector<2x4x256xf32> to vector<4xf32>
    %c0_2 = arith.constant 0 : index
    %c0_3 = arith.constant 0 : index
    %c0_4 = arith.constant 0 : index
    %2 = vector.load %arg1[%c0_2, %c0_3, %c0_4] : memref<2x4x256xf32, #tpu.memory_space<vmem>>, vector<2x4x256xf32>
    %3 = arith.mulf %2, %2 : vector<2x4x256xf32>
    %cst_5 = arith.constant dense<0.000000e+00> : vector<4xf32>
    %4 = vector.multi_reduction <add>, %3, %cst_5 [0, 2] : vector<2x4x256xf32> to vector<4xf32>
    %cst_6 = arith.constant 5.120000e+02 : f32
    %5 = vector.broadcast %cst_6 : f32 to vector<4xf32>
    %6 = arith.divf %1, %5 : vector<4xf32>
    %cst_7 = arith.constant 5.120000e+02 : f32
    %7 = vector.broadcast %cst_7 : f32 to vector<4xf32>
    %8 = arith.divf %4, %7 : vector<4xf32>
    %9 = arith.mulf %6, %6 : vector<4xf32>
    %10 = arith.subf %8, %9 : vector<4xf32>
    %cst_8 = arith.constant 0.000000e+00 : f32
    %11 = vector.broadcast %cst_8 : f32 to vector<4xf32>
    %12 = arith.maximumf %10, %11 : vector<4xf32>
    %cst_9 = arith.constant 9.99999974E-5 : f32
    %13 = vector.broadcast %cst_9 : f32 to vector<4xf32>
    %14 = arith.addf %12, %13 : vector<4xf32>
    %15 = math.rsqrt %14 : vector<4xf32>
    %c0_10 = arith.constant 0 : index
    %c0_11 = arith.constant 0 : index
    %c0_12 = arith.constant 0 : index
    %16 = vector.load %arg2[%c0_10, %c0_11, %c0_12] : memref<2x4x1xf32, #tpu.memory_space<vmem>>, vector<2x4x1xf32>
    %17 = vector.shape_cast %15 : vector<4xf32> to vector<1x4x1xf32>
    %18 = vector.broadcast %17 : vector<1x4x1xf32> to vector<2x4x1xf32>
    %19 = arith.mulf %16, %18 : vector<2x4x1xf32>
    %c0_13 = arith.constant 0 : index
    %c0_14 = arith.constant 0 : index
    %c0_15 = arith.constant 0 : index
    %20 = vector.load %arg3[%c0_13, %c0_14, %c0_15] : memref<2x4x1xf32, #tpu.memory_space<vmem>>, vector<2x4x1xf32>
    %21 = vector.shape_cast %6 : vector<4xf32> to vector<1x4x1xf32>
    %22 = vector.broadcast %21 : vector<1x4x1xf32> to vector<2x4x1xf32>
    %23 = arith.mulf %22, %19 : vector<2x4x1xf32>
    %24 = arith.subf %20, %23 : vector<2x4x1xf32>
    %c0_16 = arith.constant 0 : index
    %c0_17 = arith.constant 0 : index
    %c0_18 = arith.constant 0 : index
    %25 = vector.load %arg1[%c0_16, %c0_17, %c0_18] : memref<2x4x256xf32, #tpu.memory_space<vmem>>, vector<2x4x256xf32>
    %26 = vector.broadcast %19 : vector<2x4x1xf32> to vector<2x4x256xf32>
    %27 = arith.mulf %25, %26 : vector<2x4x256xf32>
    %28 = vector.broadcast %24 : vector<2x4x1xf32> to vector<2x4x256xf32>
    %29 = arith.addf %27, %28 : vector<2x4x256xf32>
    %c0_19 = arith.constant 0 : index
    %c0_20 = arith.constant 0 : index
    %c0_21 = arith.constant 0 : index
    %30 = vector.load %arg4[%c0_19, %c0_20, %c0_21] : memref<2x4x256xf32, #tpu.memory_space<vmem>>, vector<2x4x256xf32>
    tpu.vector_store %arg4[%c0_19, %c0_20, %c0_21], %29 {strides = array<i32>} : memref<2x4x256xf32, #tpu.memory_space<vmem>>, vector<2x4x256xf32>,
    return
  }
  func.func @transform_0(%arg0: i32) -> (i32, i32, i32) {
    %c0_i32 = arith.constant 0 : i32
    %c0_i32_0 = arith.constant 0 : i32
    %c0_i32_1 = arith.constant 0 : i32
    return %c0_i32, %arg0, %c0_i32_0 : i32, i32, i32
  }
  func.func @transform_1(%arg0: i32) -> (i32, i32, i32) {
    %c0_i32 = arith.constant 0 : i32
    %c0_i32_0 = arith.constant 0 : i32
    %c0_i32_1 = arith.constant 0 : i32
    return %c0_i32, %arg0, %c0_i32_0 : i32, i32, i32
  }
  func.func @transform_2(%arg0: i32) -> (i32, i32, i32) {
    %c0_i32 = arith.constant 0 : i32
    %c0_i32_0 = arith.constant 0 : i32
    %c0_i32_1 = arith.constant 0 : i32
    return %c0_i32, %arg0, %c0_i32_0 : i32, i32, i32
  }
  func.func @transform_3(%arg0: i32) -> (i32, i32, i32) {
    %c0_i32 = arith.constant 0 : i32
    %c0_i32_0 = arith.constant 0 : i32
    %c0_i32_1 = arith.constant 0 : i32
    return %c0_i32, %arg0, %c0_i32_0 : i32, i32, i32
  }
}

</mosaic_0001>

<llo_original>
// kernel: tpu_custom_call.1
$region0: #{tpu_custom_call.1}
  #allocation0 [shape = 'u32[]', space=smem, size = 0x4, offset = 0x4, fixed_abs, tag = 'smem constant byte address 0x4 - core index']
  #allocation1 [shape = 'u32[144,128]{1,0:T(1,128)}', space=vmem, size = 0x12000, scoped, tag = 'internal scratch']
  %s0 = inlined_call_operand.vmem [shape: f32[2,4,256], index: 0, kind: input, shape index: {}]
  %s1 = inlined_call_operand.vmem [shape: f32[2,4,1], index: 1, kind: input, shape index: {}]
  %s2 = inlined_call_operand.vmem [shape: f32[2,4,1], index: 2, kind: input, shape index: {}]
  %s3 = inlined_call_operand.hbm [shape: f32[2,4,256], index: 3, kind: output, shape index: {}]
  %s4 = sld [smem:[#allocation0]]
  $region22: #{tpu_custom_call.1} parent=0
    _
  %s6 = ssub.s32 1, %s4
  %s7 = scalar_select 0, %s6, %s4
  $region1: #{tpu_custom_call.1} parent=0
    #allocation2 [shape = 'u8[8192]{0}', space=vmem, size = 0x2000, scoped, tag = 'output window, operand 0, single buffered']
    #allocation3 [shape = 's32[1]{0}', space=sflag, size = 0x4, scoped, tag = 'scoped memory for tpu_custom_call.1']
    %8 = vsyncpa [#allocation3], 0
    // Predicated region
    $region2: #{tpu_custom_call.1} parent=1 // pred_check
      _
    $region3: #{tpu_custom_call.1} parent=1 // pred_check_branch
      %10 = sbr.rel (0) target = $region5
    $region4: #{tpu_custom_call.1} parent=1 // pred_region
      _
    $region5: #{tpu_custom_call.1} parent=1 // pred_fallthru
      _
    // Predicated region
    $region6: #{tpu_custom_call.1} parent=1 // pred_check
      _
    $region7: #{tpu_custom_call.1} parent=1 // pred_check_branch
      %12 = sbr.rel (0) target = $region9
    $region8: #{tpu_custom_call.1} parent=1 // pred_region
      _
    $region9: #{tpu_custom_call.1} parent=1 // pred_fallthru
      _
    // Predicated region
    $region10: #{tpu_custom_call.1} parent=1 // pred_check
      _
    $region11: #{tpu_custom_call.1} parent=1 // pred_check_branch
      %14 = sbr.rel (0) target = $region13
    $region12: #{tpu_custom_call.1} parent=1 // pred_region
      _
    $region13: #{tpu_custom_call.1} parent=1 // pred_fallthru
      _
    %v15 = vld [vmem:[%s0] sm:$0xff]
    %v16 = vld [vmem:[%s0 + $0x8] sm:$0xff]
    %v19 = vcombine.high %v15, %v15
    %v20 = vcombine.high %v16, %v16
    %vm23 = vcmask 1043456
    %v24 = vsel %vm23, %v15, 0.0
    %v25 = vsel %vm23, %v19, 0.0
    %v26 = vadd.f32 %v24, %v25
    %v27 = vsel %vm23, %v16, 0.0
    %v28 = vadd.f32 %v26, %v27
    %v29 = vsel %vm23, %v20, 0.0
    %v30 = vadd.f32 %v28, %v29
    %31 = vadd.xlane.f32.xlu0 %v30
    %v32 = vpop.xlane.xlu0 %31
    %v33 = vmul.f32 %v15, %v15
    %v34 = vmul.f32 %v16, %v16
    %v37 = vcombine.high %v33, %v33
    %v38 = vcombine.high %v34, %v34
    %v41 = vsel %vm23, %v33, 0.0
    %v42 = vsel %vm23, %v37, 0.0
    %v43 = vadd.f32 %v41, %v42
    %v44 = vsel %vm23, %v34, 0.0
    %v45 = vadd.f32 %v43, %v44
    %v46 = vsel %vm23, %v38, 0.0
    %v47 = vadd.f32 %v45, %v46
    %48 = vadd.xlane.f32.xlu0 %v47
    %v49 = vpop.xlane.xlu0 %48
    %v50 = vrcp.pop 512.0
    %v51 = vmul.f32 %v32, %v50
    %v52 = vmul.f32 %v49, %v50
    %v53 = vmul.f32 %v51, %v51
    %v54 = vsub.f32 %v52, %v53
    %v55 = vmax.f32 %v54, 0.0
    %v56 = vadd.f32 %v55, 0.0001
    %v57 = vrsqrt.pop %v56
    %v58 = vld [vmem:[%s1] sm:$0xf]
    %v59 = vld [vmem:[%s1 + $0x4] sm:$0xf]
    %v60 = vmul.f32 %v58, %v57
    %v61 = vmul.f32 %v59, %v57
    %v62 = vld [vmem:[%s2] sm:$0xf]
    %v63 = vld [vmem:[%s2 + $0x4] sm:$0xf]
    %v64 = vmul.f32 %v51, %v60
    %v65 = vmul.f32 %v51, %v61
    %v66 = vsub.f32 %v62, %v64
    %v67 = vsub.f32 %v63, %v65
    %69 = vset.pattern.permute.xlu0 0
    %70 = vperm.xlu0 %69, %v60
    %v71 = vpop.permute.xlu0 %70
    %73 = vset.pattern.permute.xlu0 0
    %74 = vperm.xlu0 %73, %v61
    %v75 = vpop.permute.xlu0 %74
    %v77 = vunpack.c.l.s4 839922192
    %v78 = vunpack.c.0.s8 %v77
    %v79 = vlaneseq
    %v80 = vshrl.u32 %v79, 7
    %v81 = vsub.s32 %v78, %v80
    %v82 = vrot.slane %v71, %v81
    %v84 = vunpack.c.l.s4 839922192
    %v85 = vunpack.c.0.s8 %v84
    %v86 = vlaneseq
    %v87 = vshrl.u32 %v86, 7
    %v88 = vsub.s32 %v85, %v87
    %v89 = vrot.slane %v75, %v88
    %v92 = vmul.f32 %v15, %v82
    %v93 = vmul.f32 %v16, %v89
    %95 = vset.pattern.permute.xlu0 0
    %96 = vperm.xlu0 %95, %v66
    %v97 = vpop.permute.xlu0 %96
    %99 = vset.pattern.permute.xlu0 0
    %100 = vperm.xlu0 %99, %v67
    %v101 = vpop.permute.xlu0 %100
    %v103 = vunpack.c.l.s4 839922192
    %v104 = vunpack.c.0.s8 %v103
    %v105 = vlaneseq
    %v106 = vshrl.u32 %v105, 7
    %v107 = vsub.s32 %v104, %v106
    %v108 = vrot.slane %v97, %v107
    %v110 = vunpack.c.l.s4 839922192
    %v111 = vunpack.c.0.s8 %v110
    %v112 = vlaneseq
    %v113 = vshrl.u32 %v112, 7
    %v114 = vsub.s32 %v111, %v113
    %v115 = vrot.slane %v101, %v114
    %v118 = vadd.f32 %v92, %v108
    %v119 = vadd.f32 %v93, %v115
    %120 = vst [vmem:[#allocation2] sm:$0xff] %v118
    %121 = vst [vmem:[#allocation2 + $0x8] sm:$0xff] %v119
    // Predicated region
    $region14: #{tpu_custom_call.1} parent=1 // pred_check
      _
    $region15: #{tpu_custom_call.1} parent=1 // pred_check_branch
      %123 = sbr.rel (0) target = $region17
    $region16: #{tpu_custom_call.1} parent=1 // pred_region
      %s125 = ssub.s32 256, 256
      %126 = vsyncadd [#allocation3], %s125
      %s127 = sshll.u32 [#allocation2], 4
      %s128 = int_to_ptr.vmem [resolvable:$true] %s127
      %133 = dma.vmem_to_hbm [thread:$0]  %s128, 256, %s3, [#allocation3], 128, 128, 8
    $region17: #{tpu_custom_call.1} parent=1 // pred_fallthru
      _
    // Predicated region
    $region18: #{tpu_custom_call.1} parent=1 // pred_check
      _
    $region19: #{tpu_custom_call.1} parent=1 // pred_check_branch
      %135 = sbr.rel (0) target = $region21
    $region20: #{tpu_custom_call.1} parent=1 // pred_region
      %136 = dma.done [#allocation3], 256
    $region21: #{tpu_custom_call.1} parent=1 // pred_fallthru
      _
    %137 = vsyncpa [#allocation3], 1

</llo_original>
